<compile_context>
chip_gen: v6e
topology: v6e:2x2x1
jax: 0.10.0
libtpu: 0.0.40
codegen_flags: <defaults>
</compile_context>

<pallas_src>
import jax
import jax.numpy as jnp
from jax.experimental import pallas as pl
from jax.experimental.pallas import tpu as pltpu

BN_EPS = 1e-5
_TL_CAP = 1024   # spatial (lane) tile cap; amortizes per-grid-step overhead


def _round_up(x, m):
    return (x + m - 1) // m * m


# ------------------------------ Pallas kernel --------------------------------

def _fuse_kernel(x_ref, w_ref, rest_ref, shift_ref, o_ref):
    # x_ref:    (Cin, TL) bf16   -- c1 tile, native channel-first layout
    # w_ref:    (E, Cin)  bf16   -- fuse-conv + BN-scale folded MLP weight
    # rest_ref: (E, TL)   bf16   -- pre-summed, pre-scaled upsampled scales
    # shift_ref:(E, 1)    f32    -- folded biases + BN shift
    # o_ref:    (E, TL)   f32    -- NCHW output tile (lane-dense spatial axis)
    y = jnp.dot(w_ref[...], x_ref[...], preferred_element_type=jnp.float32)
    y = y + rest_ref[...].astype(jnp.float32) + shift_ref[...]
    o_ref[...] = jnp.maximum(y, 0.0)


def fuse_full_res(x_ncl, w_ec, rest_nel, shift, tl_cap=_TL_CAP):
    """relu(w @ x + rest + shift) over (n, E, L), tiled along the spatial axis."""
    n, cin, L = x_ncl.shape
    E = w_ec.shape[0]

    # Waste-proof tiling: fix the tile count first, then round the tile up to a
    # lane multiple -> the last tile is never almost entirely padding.
    ntiles = pl.cdiv(L, tl_cap)
    tl = _round_up(pl.cdiv(L, ntiles), 128)
    Lp = ntiles * tl
    if Lp != L:
        x_ncl = jnp.pad(x_ncl, ((0, 0), (0, 0), (0, Lp - L)))
        rest_nel = jnp.pad(rest_nel, ((0, 0), (0, 0), (0, Lp - L)))

    # VMEM sized to need: double-buffered x/rest/out tiles + weights + shift.
    vmem_est = 2 * (cin * tl * 2 + E * tl * 2 + E * tl * 4 + E * cin * 2 + E * 4)
    vmem_limit = int(min(max(2 * vmem_est, 16 * 2**20), 48 * 2**20))

    out = pl.pallas_call(
        _fuse_kernel,
        out_shape=jax.ShapeDtypeStruct((n, E, Lp), jnp.float32),
        grid=(n, ntiles),
        in_specs=[
            pl.BlockSpec((None, cin, tl), lambda b, i: (b, 0, i)),
            pl.BlockSpec((E, cin), lambda b, i: (0, 0)),
            pl.BlockSpec((None, E, tl), lambda b, i: (b, 0, i)),
            pl.BlockSpec((E, 1), lambda b, i: (0, 0)),
        ],
        out_specs=pl.BlockSpec((None, E, tl), lambda b, i: (b, 0, i)),
        compiler_params=pltpu.CompilerParams(
            dimension_semantics=("parallel", "parallel"),
            vmem_limit_bytes=vmem_limit),
    )(x_ncl, w_ec, rest_nel, shift.reshape(E, 1))
    return out[:, :, :L] if Lp != L else out


# ------------------------------ JAX glue ops ----------------------------------

def make_interp_matrix(out_dim, in_dim):
    """Row-stochastic 1-D bilinear resize matrix, align_corners=False."""
    if out_dim == in_dim:
        return jnp.eye(in_dim, dtype=jnp.float32)
    src = (jnp.arange(out_dim, dtype=jnp.float32) + 0.5) * (in_dim / out_dim) - 0.5
    src = jnp.clip(src, 0.0, in_dim - 1.0)
    i0 = jnp.floor(src).astype(jnp.int32)
    i1 = jnp.minimum(i0 + 1, in_dim - 1)
    frac = src - i0.astype(jnp.float32)
    rows = jnp.arange(out_dim)
    m = jnp.zeros((out_dim, in_dim), jnp.float32)
    m = m.at[rows, i0].add(1.0 - frac)
    m = m.at[rows, i1].add(frac)
    return m


def bilinear_upsample_nhwc(img, out_h, out_w):
    """Gather-based reference: F.interpolate(mode='bilinear', align_corners=False)."""
    n, h, w, c = img.shape

    def coords(out_dim, in_dim):
        src = (jnp.arange(out_dim, dtype=jnp.float32) + 0.5) * (in_dim / out_dim) - 0.5
        src = jnp.clip(src, 0.0, in_dim - 1.0)
        i0 = jnp.floor(src).astype(jnp.int32)
        i1 = jnp.minimum(i0 + 1, in_dim - 1)
        frac = src - i0.astype(jnp.float32)
        return i0, i1, frac

    y0, y1, fy = coords(out_h, h)
    x0, x1, fx = coords(out_w, w)
    v00 = img[:, y0[:, None], x0[None, :], :]
    v01 = img[:, y0[:, None], x1[None, :], :]
    v10 = img[:, y1[:, None], x0[None, :], :]
    v11 = img[:, y1[:, None], x1[None, :], :]
    wy = fy[None, :, None, None]
    wx = fx[None, None, :, None]
    top = v00 * (1.0 - wx) + v01 * wx
    bot = v10 * (1.0 - wx) + v11 * wx
    return top * (1.0 - wy) + bot * wy


# ------------------------------ forward pass ----------------------------------

def segformer_head_forward(params, inputs):
    """inputs: (c1, c2, c3, c4) in NCHW.  Returns NCHW (n, E, H1, W1) f32."""
    c1, c2, c3, c4 = inputs
    n = c1.shape[0]
    H1, W1 = c1.shape[2], c1.shape[3]
    E = params["embedding_dim"]
    hp = jax.lax.Precision.HIGHEST
    bf16 = jnp.bfloat16
    f = params["fuse"]
    conv_w = f["conv_w"]                                  # (E, 4E): [c4|c3|c2|c1]
    scale = f["gamma"] * jax.lax.rsqrt(f["var"] + BN_EPS)

    # Fold fuse-conv slice AND the BN scale into each scale's MLP weight;
    # fold all biases + BN shift into one per-channel shift.
    order = ("c4", "c3", "c2", "c1")
    folded_w = {}
    bias_total = jnp.zeros((E,), jnp.float32)
    for s, name in enumerate(order):
        wf_s = conv_w[:, s * E:(s + 1) * E]                          # (E, E)
        we = jnp.dot(wf_s, params[name]["w"], precision=hp)          # (E, Cin)
        folded_w[name] = we * scale[:, None]                         # BN scale folded
        bias_total = bias_total + jnp.dot(wf_s, params[name]["b"], precision=hp)
    shift = bias_total * scale + (f["beta"] - f["mean"] * scale)

    # Low-resolution scales: bf16 XLA einsums (projection + separable bilinear
    # interpolation as matmuls), accumulated inline -- no zero-fill, no Pallas
    # round trips for tiles this small, and XLA fuses the chain.
    rest = None
    for name, c in (("c4", c4), ("c3", c3), ("c2", c2)):
        h, w = c.shape[2], c.shape[3]
        y = jnp.einsum("nchw,ec->nehw", c.astype(bf16), folded_w[name].astype(bf16))
        if (h, w) != (H1, W1):
            ah = make_interp_matrix(H1, h).astype(bf16)
            aw = make_interp_matrix(W1, w).astype(bf16)
            y = jnp.einsum("Hh,nehw->neHw", ah, y)
            y = jnp.einsum("Ww,neHw->neHW", aw, y)
        rest = y if rest is None else rest + y
    rest = rest.astype(bf16).reshape(n, E, H1 * W1)

    # Full-resolution c1 branch + cross-scale sum + folded bias/BN + ReLU in a
    # single Pallas pass; consumed and produced in native NCHW layout.
    x1 = c1.reshape(n, c1.shape[1], H1 * W1).astype(bf16)
    out = fuse_full_res(x1, folded_w["c1"].astype(bf16), rest, shift)
    # nn.Dropout2d is identity in eval / inference mode.
    return out.reshape(n, E, H1, W1)


# ------------------------------ pure-JAX ref -----------------------------------
# Mirrors the PyTorch module exactly (unfused, f32): per-scale MLP, gather-based
# bilinear upsample, channel concat, 1x1 conv, BN(eval), ReLU.

def _ref_forward(params, inputs):
    c1, c2, c3, c4 = inputs
    n = c1.shape[0]
    H1, W1 = c1.shape[2], c1.shape[3]
    E = params["embedding_dim"]
    hp = jax.lax.Precision.HIGHEST
    feats = []
    for name, c in (("c4", c4), ("c3", c3), ("c2", c2), ("c1", c1)):
        _, cin, h, w = c.shape
        x = c.reshape(n, cin, h * w).transpose(0, 2, 1)
        y = jnp.einsum("nlc,ec->nle", x, params[name]["w"], precision=hp) + params[name]["b"]
        y = y.reshape(n, h, w, E)
        if (h, w) != (H1, W1):
            y = bilinear_upsample_nhwc(y, H1, W1)
        feats.append(y)
    cat = jnp.concatenate(feats, axis=-1)
    f = params["fuse"]
    y = jnp.einsum("nhwc,ec->nhwe", cat, f["conv_w"], precision=hp)
    y = (y - f["mean"]) * (f["gamma"] / jnp.sqrt(f["var"] + BN_EPS)) + f["beta"]
    y = jnp.maximum(y, 0.0)
    return y.transpose(0, 3, 1, 2)


# --------------------------------- main ----------------------------------------

def make_params(key, in_channels, embedding_dim):
    params = {"embedding_dim": embedding_dim}
    names = ["c1", "c2", "c3", "c4"]
    keys = jax.random.split(key, 2 * len(names) + 5)
    k = iter(keys)
    for name, cin in zip(names, in_channels):
        params[name] = {
            "w": 0.1 * jax.random.normal(next(k), (embedding_dim, cin), jnp.float32),
            "b": 0.1 * jax.random.normal(next(k), (embedding_dim,), jnp.float32),
        }
    params["fuse"] = {
        # Conv2d(4E, E, kernel_size=1, bias=False): weight (E, 4E, 1, 1) -> (E, 4E)
        "conv_w": 0.05 * jax.random.normal(next(k), (embedding_dim, 4 * embedding_dim), jnp.float32),
        "gamma": 0.5 + jax.random.uniform(next(k), (embedding_dim,), jnp.float32),
        "beta": 0.1 * jax.random.normal(next(k), (embedding_dim,), jnp.float32),
        "mean": 0.1 * jax.random.normal(next(k), (embedding_dim,), jnp.float32),
        "var": 0.5 + jax.random.uniform(next(k), (embedding_dim,), jnp.float32),
    }
    return params


if __name__ == "__main__":
    key = jax.random.PRNGKey(0)
    in_channels = [8, 16, 32, 64]     # small stand-ins for [32, 64, 160, 256]
    embedding_dim = 128               # small stand-in for 768
    batch = 2
    spatial = [16, 8, 4, 2]           # c1 .. c4 (stride-4 .. stride-32 pyramid)

    k_param, k1, k2, k3, k4 = jax.random.split(key, 5)
    params = make_params(k_param, in_channels, embedding_dim)
    c1 = jax.random.normal(k1, (batch, in_channels[0], spatial[0], spatial[0]), jnp.float32)
    c2 = jax.random.normal(k2, (batch, in_channels[1], spatial[1], spatial[1]), jnp.float32)
    c3 = jax.random.normal(k3, (batch, in_channels[2], spatial[2], spatial[2]), jnp.float32)
    c4 = jax.random.normal(k4, (batch, in_channels[3], spatial[3], spatial[3]), jnp.float32)
    inputs = (c1, c2, c3, c4)

    out = segformer_head_forward(params, inputs)
    out = jax.block_until_ready(out)
    assert out.shape == (batch, embedding_dim, spatial[0], spatial[0]), out.shape

    ref = jax.block_until_ready(_ref_forward(params, inputs))
    # bf16 operands vs f32 HIGHEST reference -> looser tolerance (per review).
    max_err = float(jnp.abs(out - ref).max())
    assert jnp.allclose(out, ref, atol=5e-2, rtol=5e-2), max_err

    print("KERNEL_OK")
</pallas_src>

<mosaic_0001>
module attributes {stable_mosaic.version = 11 : i64} {
  func.func @_fuse_kernel(%arg0: i32, %arg1: i32, %arg2: memref<1x8x256xbf16, #tpu.memory_space<vmem>>, %arg3: memref<128x8xbf16, #tpu.memory_space<vmem>>, %arg4: memref<1x128x256xbf16, #tpu.memory_space<vmem>>, %arg5: memref<128x1xf32, #tpu.memory_space<vmem>>, %arg6: memref<1x128x256xf32, #tpu.memory_space<vmem>>) attributes {dimension_semantics = [#tpu.dimension_semantics<parallel>, #tpu.dimension_semantics<parallel>], iteration_bounds = array<i64: 2, 1>, scalar_prefetch = 0 : i64, scratch_operands = 0 : i64, tpu.core_type = #tpu.core_type<tc>, window_params = [{transform_indices = @transform_0, window_bounds = array<i64: 1, 8, 256>}, {pipeline_mode = #tpu.pipeline_mode<synchronous>, transform_indices = @transform_1, window_bounds = array<i64: 128, 8>}, {transform_indices = @transform_2, window_bounds = array<i64: 1, 128, 256>}, {pipeline_mode = #tpu.pipeline_mode<synchronous>, transform_indices = @transform_3, window_bounds = array<i64: 128, 1>}, {transform_indices = @transform_4, window_bounds = array<i64: 1, 128, 256>}]} {
    %c0 = arith.constant 0 : index
    %c0_0 = arith.constant 0 : index
    %0 = vector.load %arg3[%c0, %c0_0] : memref<128x8xbf16, #tpu.memory_space<vmem>>, vector<128x8xbf16>
    %c0_1 = arith.constant 0 : index
    %c0_2 = arith.constant 0 : index
    %c0_3 = arith.constant 0 : index
    %1 = vector.load %arg2[%c0_1, %c0_2, %c0_3] : memref<1x8x256xbf16, #tpu.memory_space<vmem>>, vector<1x8x256xbf16>
    %2 = vector.shape_cast %1 : vector<1x8x256xbf16> to vector<8x256xbf16>
    %cst = arith.constant dense<0.000000e+00> : vector<128x256xf32>
    %3 = tpu.matmul %0, %2, %cst {dimension_numbers = #tpu.dot_dimension_numbers<[1], [0], [0], [1], [0, 0, 1, 1], [], []>} : vector<128x8xbf16>, vector<8x256xbf16>, vector<128x256xf32> -> vector<128x256xf32>
    %c0_4 = arith.constant 0 : index
    %c0_5 = arith.constant 0 : index
    %c0_6 = arith.constant 0 : index
    %4 = vector.load %arg4[%c0_4, %c0_5, %c0_6] : memref<1x128x256xbf16, #tpu.memory_space<vmem>>, vector<1x128x256xbf16>
    %5 = vector.shape_cast %4 : vector<1x128x256xbf16> to vector<128x256xbf16>
    %6 = arith.extf %5 : vector<128x256xbf16> to vector<128x256xf32>
    %7 = arith.addf %3, %6 : vector<128x256xf32>
    %c0_7 = arith.constant 0 : index
    %c0_8 = arith.constant 0 : index
    %8 = vector.load %arg5[%c0_7, %c0_8] : memref<128x1xf32, #tpu.memory_space<vmem>>, vector<128x1xf32>
    %9 = vector.broadcast %8 : vector<128x1xf32> to vector<128x256xf32>
    %10 = arith.addf %7, %9 : vector<128x256xf32>
    %cst_9 = arith.constant 0.000000e+00 : f32
    %11 = vector.broadcast %cst_9 : f32 to vector<128x256xf32>
    %12 = arith.maximumf %10, %11 : vector<128x256xf32>
    %c0_10 = arith.constant 0 : index
    %c0_11 = arith.constant 0 : index
    %c0_12 = arith.constant 0 : index
    %13 = vector.load %arg6[%c0_10, %c0_11, %c0_12] : memref<1x128x256xf32, #tpu.memory_space<vmem>>, vector<1x128x256xf32>
    %14 = vector.shape_cast %13 : vector<1x128x256xf32> to vector<128x256xf32>
    %15 = vector.shape_cast %12 : vector<128x256xf32> to vector<1x128x256xf32>
    tpu.vector_store %arg6[%c0_10, %c0_11, %c0_12], %15 {strides = array<i32>} : memref<1x128x256xf32, #tpu.memory_space<vmem>>, vector<1x128x256xf32>,
    return
  }
  func.func @transform_0(%arg0: i32, %arg1: i32) -> (i32, i32, i32) {
    %c0_i32 = arith.constant 0 : i32
    %c0_i32_0 = arith.constant 0 : i32
    return %arg0, %c0_i32, %arg1 : i32, i32, i32
  }
  func.func @transform_1(%arg0: i32, %arg1: i32) -> (i32, i32) {
    %c0_i32 = arith.constant 0 : i32
    %c0_i32_0 = arith.constant 0 : i32
    %c0_i32_1 = arith.constant 0 : i32
    return %c0_i32, %c0_i32_0 : i32, i32
  }
  func.func @transform_2(%arg0: i32, %arg1: i32) -> (i32, i32, i32) {
    %c0_i32 = arith.constant 0 : i32
    %c0_i32_0 = arith.constant 0 : i32
    return %arg0, %c0_i32, %arg1 : i32, i32, i32
  }
  func.func @transform_3(%arg0: i32, %arg1: i32) -> (i32, i32) {
    %c0_i32 = arith.constant 0 : i32
    %c0_i32_0 = arith.constant 0 : i32
    %c0_i32_1 = arith.constant 0 : i32
    return %c0_i32, %c0_i32_0 : i32, i32
  }
  func.func @transform_4(%arg0: i32, %arg1: i32) -> (i32, i32, i32) {
    %c0_i32 = arith.constant 0 : i32
    %c0_i32_0 = arith.constant 0 : i32
    return %arg0, %c0_i32, %arg1 : i32, i32, i32
  }
}

</mosaic_0001>

<llo_original>
// kernel: tpu_custom_call.1
$region0: #{tpu_custom_call.1}
  #allocation0 [shape = 'u32[]', space=smem, size = 0x4, offset = 0x4, fixed_abs, tag = 'smem constant byte address 0x4 - core index']
  #allocation1 [shape = 'u32[144,128]{1,0:T(1,128)}', space=vmem, size = 0x12000, scoped, tag = 'internal scratch']
  %s0 = inlined_call_operand.vmem [shape: bf16[2,8,256], index: 0, kind: input, shape index: {}]
  %s1 = inlined_call_operand.vmem [shape: bf16[128,8], index: 1, kind: input, shape index: {}]
  %s2 = inlined_call_operand.hbm [shape: bf16[2,128,256], index: 2, kind: input, shape index: {}]
  %s3 = inlined_call_operand.vmem [shape: f32[128,1], index: 3, kind: input, shape index: {}]
  %s4 = inlined_call_operand.hbm [shape: f32[2,128,256], index: 4, kind: output, shape index: {}]
  %s5 = sld [smem:[#allocation0]]
  $region53: #{tpu_custom_call.1} parent=0
    _
  %s7 = ssub.s32 1, %s5
  %s8 = scalar_select 0, %s7, %s5
  $region1: #{tpu_custom_call.1} parent=0
    #allocation2 [shape = 'u8[131072]{0}', space=vmem, size = 0x20000, scoped, tag = 'input window, operand 2']
    #allocation3 [shape = 's32[2]{0}', space=sflag, size = 0x8, scoped, tag = 'scoped memory for tpu_custom_call.1']
    #allocation4 [shape = 's32[2]{0}', space=sflag, size = 0x8, scoped, tag = 'scoped memory for tpu_custom_call.1']
    #allocation5 [shape = 'u8[262144]{0}', space=vmem, size = 0x40000, scoped, tag = 'output window, operand 0']
    %9 = vsyncpa [#allocation3], 0
    %s10 = scalar_lea.sflag [#allocation3], 1
    %11 = vsyncpa %s10, 0
    %12 = vsyncpa [#allocation4], 0
    %s13 = scalar_lea.sflag [#allocation4], 1
    %14 = vsyncpa %s13, 0
    loop: start=0, step=1, limit=4
    $region2: #{tpu_custom_call.1} parent=1 // loop_pre_header
      _
    $region3: #{tpu_custom_call.1} parent=1 // loop_header
      %s16 = sphi 0, %s20
      %p17 = scmp.ge.s32.totalorder %s16, 4
      %s23 = sphi 0, %s35
      %s24 = sphi 0, %s31
      %s25 = sphi 0, %s23
      %s26 = sphi 0, %s24
      %s27 = sphi 0, %s25
      %s28 = sphi 0, %s26
      %s40 = sphi 0, %s42
      %s43 = sphi 0, %s40
      %s44 = sphi 0, %s43
      %s60 = sphi 0, %s44
      %s64 = sphi 0, %s64
      %s66 = sphi 0, %s64
      %s67 = sphi 0, %s66
      %s81 = sphi 0, %s67
      %s89 = sphi 0, %s91
      %s92 = sphi 0, %s89
      %s93 = sphi 0, %s92
      %s109 = sphi 0, %s93
      %s113 = sphi 0, %s113
      %s115 = sphi 0, %s113
      %s116 = sphi 0, %s115
      %s130 = sphi 0, %s116
      %s138 = sphi 0, %s140
      %s141 = sphi 0, %s138
      %s142 = sphi 0, %s141
      %s158 = sphi 0, %s142
    $region4: #{tpu_custom_call.1} parent=1 // loop_header_branch
      %19 = sbr.rel (%p17) target = $region8
    $region5: #{tpu_custom_call.1} parent=1 // loop_body
      %s21 = ssub.s32 %s16, 1
      %s22 = ssub.s32 %s16, 2
      %s29 = sadd.s32 1, %s24
      %p30 = scmp.ge.s32.totalorder %s29, 1
      %s31 = scalar_select %p30, 0, %s29
      %s32 = sadd.s32 1, %s23
      %s33 = scalar_select %p30, %s32, %s23
      %p34 = scmp.ge.s32.totalorder %s33, 2
      %s35 = scalar_select %p34, 0, %s33
      %s36 = ssub.s32 %s23, %s35
      %s37 = ssub.s32 %s24, %s31
      %s38 = sor.u32 %s36, %s37
      %p39 = scmp.eq.s32.totalorder %s38, 0
      %s41 = sadd.s32 %s40, 1
      %s42 = scalar_select %p39, %s40, %s41
      %p45 = pneg %p39
      %p46 = scmp.eq.s32.totalorder %s16, 1
      %p47 = por %p45, %p46
      %p48 = scmp.ne.s32.totalorder %s40, %s43
      %p49 = scmp.eq.s32.totalorder %s16, 0
      %p50 = por %p48, %p49
      %p51 = scmp.ne.s32.totalorder %s40, %s43
      %p52 = scmp.eq.s32.totalorder %s21, 1
      %p53 = por %p51, %p52
      %p54 = scmp.ne.s32.totalorder %s43, %s44
      %p55 = scmp.eq.s32.totalorder %s21, 0
      %p56 = por %p54, %p55
      %p57 = scmp.ne.s32.totalorder %s43, %s44
      %p58 = scmp.eq.s32.totalorder %s22, 1
      %p59 = por %p57, %p58
      %p61 = scmp.ne.s32.totalorder %s44, %s60
      %p62 = scmp.eq.s32.totalorder %s22, 0
      %p63 = por %p61, %p62
      %s65 = sadd.s32 %s64, 1
      %p68 = scmp.eq.s32.totalorder %s16, 1
      %p69 = scmp.ne.s32.totalorder %s64, %s66
      %p70 = scmp.eq.s32.totalorder %s16, 0
      %p71 = por %p69, %p70
      %p72 = scmp.ne.s32.totalorder %s64, %s66
      %p73 = scmp.eq.s32.totalorder %s21, 1
      %p74 = por %p72, %p73
      %p75 = scmp.ne.s32.totalorder %s66, %s67
      %p76 = scmp.eq.s32.totalorder %s21, 0
      %p77 = por %p75, %p76
      %p78 = scmp.ne.s32.totalorder %s66, %s67
      %p79 = scmp.eq.s32.totalorder %s22, 1
      %p80 = por %p78, %p79
      %p82 = scmp.ne.s32.totalorder %s67, %s81
      %p83 = scmp.eq.s32.totalorder %s22, 0
      %p84 = por %p82, %p83
      %s85 = ssub.s32 %s23, %s35
      %s86 = ssub.s32 %s24, %s31
      %s87 = sor.u32 %s85, %s86
      %p88 = scmp.eq.s32.totalorder %s87, 0
      %s90 = sadd.s32 %s89, 1
      %s91 = scalar_select %p88, %s89, %s90
      %p94 = pneg %p88
      %p95 = scmp.eq.s32.totalorder %s16, 1
      %p96 = por %p94, %p95
      %p97 = scmp.ne.s32.totalorder %s89, %s92
      %p98 = scmp.eq.s32.totalorder %s16, 0
      %p99 = por %p97, %p98
      %p100 = scmp.ne.s32.totalorder %s89, %s92
      %p101 = scmp.eq.s32.totalorder %s21, 1
      %p102 = por %p100, %p101
      %p103 = scmp.ne.s32.totalorder %s92, %s93
      %p104 = scmp.eq.s32.totalorder %s21, 0
      %p105 = por %p103, %p104
      %p106 = scmp.ne.s32.totalorder %s92, %s93
      %p107 = scmp.eq.s32.totalorder %s22, 1
      %p108 = por %p106, %p107
      %p110 = scmp.ne.s32.totalorder %s93, %s109
      %p111 = scmp.eq.s32.totalorder %s22, 0
      %p112 = por %p110, %p111
      %s114 = sadd.s32 %s113, 1
      %p117 = scmp.eq.s32.totalorder %s16, 1
      %p118 = scmp.ne.s32.totalorder %s113, %s115
      %p119 = scmp.eq.s32.totalorder %s16, 0
      %p120 = por %p118, %p119
      %p121 = scmp.ne.s32.totalorder %s113, %s115
      %p122 = scmp.eq.s32.totalorder %s21, 1
      %p123 = por %p121, %p122
      %p124 = scmp.ne.s32.totalorder %s115, %s116
      %p125 = scmp.eq.s32.totalorder %s21, 0
      %p126 = por %p124, %p125
      %p127 = scmp.ne.s32.totalorder %s115, %s116
      %p128 = scmp.eq.s32.totalorder %s22, 1
      %p129 = por %p127, %p128
      %p131 = scmp.ne.s32.totalorder %s116, %s130
      %p132 = scmp.eq.s32.totalorder %s22, 0
      %p133 = por %p131, %p132
      %s134 = ssub.s32 %s23, %s35
      %s135 = ssub.s32 %s24, %s31
      %s136 = sor.u32 %s134, %s135
      %p137 = scmp.eq.s32.totalorder %s136, 0
      %s139 = sadd.s32 %s138, 1
      %s140 = scalar_select %p137, %s138, %s139
      %p143 = pneg %p137
      %p144 = scmp.eq.s32.totalorder %s16, 1
      %p145 = por %p143, %p144
      %p146 = scmp.ne.s32.totalorder %s138, %s141
      %p147 = scmp.eq.s32.totalorder %s16, 0
      %p148 = por %p146, %p147
      %p149 = scmp.ne.s32.totalorder %s138, %s141
      %p150 = scmp.eq.s32.totalorder %s21, 1
      %p151 = por %p149, %p150
      %p152 = scmp.ne.s32.totalorder %s141, %s142
      %p153 = scmp.eq.s32.totalorder %s21, 0
      %p154 = por %p152, %p153
      %p155 = scmp.ne.s32.totalorder %s141, %s142
      %p156 = scmp.eq.s32.totalorder %s22, 1
      %p157 = por %p155, %p156
      %p159 = scmp.ne.s32.totalorder %s142, %s158
      %p160 = scmp.eq.s32.totalorder %s22, 0
      %p161 = por %p159, %p160
      %p162 = scmp.le.s32.totalorder 1, %s16
      %p163 = scmp.lt.s32.totalorder %s16, 3
      %p164 = pnand %p162, %p163
      %p165 = pneg %p164
      // Predicated region
      $region9: #{tpu_custom_call.1} parent=5 // pred_check
        _
      $region10: #{tpu_custom_call.1} parent=5 // pred_check_branch
        %167 = sbr.rel (%p164) target = $region12
      $region11: #{tpu_custom_call.1} parent=5 // pred_region
        %s168 = ssub.s32 %s16, 1
        // Predicated region
        $region13: #{tpu_custom_call.1} parent=11 // pred_check
          %p169 = pneg %p77
        $region14: #{tpu_custom_call.1} parent=11 // pred_check_branch
          %171 = sbr.rel (%p169) target = $region16
        $region15: #{tpu_custom_call.1} parent=11 // pred_region
          _
        $region16: #{tpu_custom_call.1} parent=11 // pred_fallthru
          _
        // Predicated region
        $region17: #{tpu_custom_call.1} parent=11 // pred_check
          %p172 = pneg %p126
        $region18: #{tpu_custom_call.1} parent=11 // pred_check_branch
          %174 = sbr.rel (%p172) target = $region20
        $region19: #{tpu_custom_call.1} parent=11 // pred_region
          _
        $region20: #{tpu_custom_call.1} parent=11 // pred_fallthru
          _
      $region12: #{tpu_custom_call.1} parent=5 // pred_fallthru
        _
      %p175 = scmp.lt.s32.totalorder %s16, 2
      // Predicated region
      $region21: #{tpu_custom_call.1} parent=5 // pred_check
        %p176 = pneg %p175
      $region22: #{tpu_custom_call.1} parent=5 // pred_check_branch
        %178 = sbr.rel (%p176) target = $region24
      $region23: #{tpu_custom_call.1} parent=5 // pred_region
        // Predicated region
        $region25: #{tpu_custom_call.1} parent=23 // pred_check
          %p179 = pneg %p50
        $region26: #{tpu_custom_call.1} parent=23 // pred_check_branch
          %181 = sbr.rel (%p179) target = $region28
        $region27: #{tpu_custom_call.1} parent=23 // pred_region
          %s182 = smul.u32 2, %s24
          %p183 = scmp.lt.s32.totalorder %s23, 1
          %s184 = scalar_select %p183, %s23, 1
          %p185 = scmp.lt.s32.totalorder %s182, 1
          %s186 = scalar_select %p185, %s182, 1
          %s187 = smul.addr %s184, 2
          %s188 = sadd.s32 %s186, %s187
          %s189 = smul.addr %s188, 4
          %s190 = scalar_lea.vmem %s0, %s189
          %s191 = smul.u32 2, %s24
        $region28: #{tpu_custom_call.1} parent=23 // pred_fallthru
          _
        // Predicated region
        $region29: #{tpu_custom_call.1} parent=23 // pred_check
          %p192 = pneg %p99
        $region30: #{tpu_custom_call.1} parent=23 // pred_check_branch
          %194 = sbr.rel (%p192) target = $region32
        $region31: #{tpu_custom_call.1} parent=23 // pred_region
          %s195 = sand.u32 %s89, 1
          %s196 = scalar_lea.sflag [#allocation3], %s195
          %s197 = sand.u32 %s89, 1
          %s198 = smul.addr %s197, 128
          %s199 = scalar_lea.vmem [#allocation2], %s198
          %s200 = smul.u32 2, %s24
          %s202 = ssub.s32 2048, 2048
          %203 = vsyncadd %s196, %s202
          %s204 = smul.addr %s23, 32
          %s205 = sadd.s32 %s200, %s204
          %s206 = smul.addr %s205, 64
          %s207 = scalar_lea.hbm %s2, %s206
          %s208 = sshll.u32 %s199, 4
          %s209 = int_to_ptr.vmem [resolvable:$true] %s208
          %214 = dma.hbm_to_vmem [thread:$0]  %s207, 2048, %s209, %s196, 128, 128, 8
        $region32: #{tpu_custom_call.1} parent=23 // pred_fallthru
          _
      $region24: #{tpu_custom_call.1} parent=5 // pred_fallthru
        _
      %p215 = scmp.le.s32.totalorder 1, %s16
      %p216 = scmp.lt.s32.totalorder %s16, 3
      %p217 = pnand %p215, %p216
      %p218 = pneg %p217
      // Predicated region
      $region33: #{tpu_custom_call.1} parent=5 // pred_check
        _
      $region34: #{tpu_custom_call.1} parent=5 // pred_check_branch
        %220 = sbr.rel (%p217) target = $region36
      $region35: #{tpu_custom_call.1} parent=5 // pred_region
        %s221 = ssub.s32 %s16, 1
        %s222 = sand.u32 %s92, 1
        %s223 = scalar_lea.sflag [#allocation3], %s222
        %s224 = sand.u32 %s92, 1
        %s225 = smul.addr %s224, 128
        %s226 = scalar_lea.vmem [#allocation2], %s225
        // Predicated region
        $region37: #{tpu_custom_call.1} parent=35 // pred_check
          %p227 = pneg %p105
        $region38: #{tpu_custom_call.1} parent=35 // pred_check_branch
          %229 = sbr.rel (%p227) target = $region40
        $region39: #{tpu_custom_call.1} parent=35 // pred_region
          %230 = dma.done %s223, 2048
        $region40: #{tpu_custom_call.1} parent=35 // pred_fallthru
          _
        %s231 = smul.u32 2, %s26
        %p232 = scmp.lt.s32.totalorder %s25, 1
        %s233 = scalar_select %p232, %s25, 1
        %p234 = scmp.lt.s32.totalorder %s231, 1
        %s235 = scalar_select %p234, %s231, 1
        %s236 = smul.addr %s233, 2
        %s237 = sadd.s32 %s235, %s236
        %s238 = smul.addr %s237, 4
        %s239 = scalar_lea.vmem %s0, %s238
        %p240 = pneg %p56
        %p241 = pneg %p53
        %p242 = pneg %p77
        %p243 = pneg %p74
        %s244 = sand.u32 %s92, 1
        %s245 = scalar_lea.sflag [#allocation3], %s244
        %s246 = sand.u32 %s92, 1
        %s247 = smul.addr %s246, 128
        %s248 = scalar_lea.vmem [#allocation2], %s247
        %p249 = pneg %p105
        %p250 = pneg %p102
        %p251 = pneg %p126
        %p252 = pneg %p123
        %p253 = pneg %p154
        %p254 = pneg %p151
        %s255 = sand.u32 %s141, 1
        %s256 = scalar_lea.sflag [#allocation4], %s255
        %s257 = sand.u32 %s141, 1
        %s258 = smul.addr %s257, 256
        %s259 = scalar_lea.vmem [#allocation5], %s258
        %s260 = smul.u32 2, %s26
        %p261 = scmp.lt.s32.totalorder %s25, 1
        %s262 = scalar_select %p261, %s25, 1
        %p263 = scmp.lt.s32.totalorder %s260, 1
        %s264 = scalar_select %p263, %s260, 1
        %s265 = smul.addr %s262, 2
        %s266 = sadd.s32 %s264, %s265
        %s267 = smul.addr %s266, 4
        %s268 = scalar_lea.vmem %s0, %s267
        %s269 = smul.u32 2, %s26
        %s270 = smul.u32 2, %s26
        %s271 = smul.u32 2, %s26
        %v273 = vld [vmem:[%s1] sm:$0xf]
        %v274 = vld [vmem:[%s1 + $0x4] sm:$0xf]
        %v275 = vld [vmem:[%s1 + $0x8] sm:$0xf]
        %v276 = vld [vmem:[%s1 + $0xc] sm:$0xf]
        %v277 = vld [vmem:[%s1 + $0x10] sm:$0xf]
        %v278 = vld [vmem:[%s1 + $0x14] sm:$0xf]
        %v279 = vld [vmem:[%s1 + $0x18] sm:$0xf]
        %v280 = vld [vmem:[%s1 + $0x1c] sm:$0xf]
        %v281 = vld [vmem:[%s1 + $0x20] sm:$0xf]
        %v282 = vld [vmem:[%s1 + $0x24] sm:$0xf]
        %v283 = vld [vmem:[%s1 + $0x28] sm:$0xf]
        %v284 = vld [vmem:[%s1 + $0x2c] sm:$0xf]
        %v285 = vld [vmem:[%s1 + $0x30] sm:$0xf]
        %v286 = vld [vmem:[%s1 + $0x34] sm:$0xf]
        %v287 = vld [vmem:[%s1 + $0x38] sm:$0xf]
        %v288 = vld [vmem:[%s1 + $0x3c] sm:$0xf]
        %v289 = vld [vmem:[%s268] sm:$0xff]
        %v290 = vld [vmem:[%s226] sm:$0xff]
        %v291 = vld [vmem:[%s226 + $0x8] sm:$0xff]
        %v292 = vld [vmem:[%s226 + $0x10] sm:$0xff]
        %v293 = vld [vmem:[%s226 + $0x18] sm:$0xff]
        %v294 = vld [vmem:[%s226 + $0x20] sm:$0xff]
        %v295 = vld [vmem:[%s226 + $0x28] sm:$0xff]
        %v296 = vld [vmem:[%s226 + $0x30] sm:$0xff]
        %v297 = vld [vmem:[%s226 + $0x38] sm:$0xff]
        %v298 = vld [vmem:[%s226 + $0x40] sm:$0xff]
        %v299 = vld [vmem:[%s226 + $0x48] sm:$0xff]
        %v300 = vld [vmem:[%s226 + $0x50] sm:$0xff]
        %v301 = vld [vmem:[%s226 + $0x58] sm:$0xff]
        %v302 = vld [vmem:[%s226 + $0x60] sm:$0xff]
        %v303 = vld [vmem:[%s226 + $0x68] sm:$0xff]
        %v304 = vld [vmem:[%s226 + $0x70] sm:$0xff]
        %v305 = vld [vmem:[%s226 + $0x78] sm:$0xff]
        %v306 = vunpack.c.l.bf16 %v290
        %v307 = vunpack.c.h.bf16 %v290
        %v308 = vunpack.c.l.bf16 %v291
        %v309 = vunpack.c.h.bf16 %v291
        %v310 = vunpack.c.l.bf16 %v292
        %v311 = vunpack.c.h.bf16 %v292
        %v312 = vunpack.c.l.bf16 %v293
        %v313 = vunpack.c.h.bf16 %v293
        %v314 = vunpack.c.l.bf16 %v294
        %v315 = vunpack.c.h.bf16 %v294
        %v316 = vunpack.c.l.bf16 %v295
        %v317 = vunpack.c.h.bf16 %v295
        %v318 = vunpack.c.l.bf16 %v296
        %v319 = vunpack.c.h.bf16 %v296
        %v320 = vunpack.c.l.bf16 %v297
        %v321 = vunpack.c.h.bf16 %v297
        %v322 = vunpack.c.l.bf16 %v298
        %v323 = vunpack.c.h.bf16 %v298
        %v324 = vunpack.c.l.bf16 %v299
        %v325 = vunpack.c.h.bf16 %v299
        %v326 = vunpack.c.l.bf16 %v300
        %v327 = vunpack.c.h.bf16 %v300
        %v328 = vunpack.c.l.bf16 %v301
        %v329 = vunpack.c.h.bf16 %v301
        %v330 = vunpack.c.l.bf16 %v302
        %v331 = vunpack.c.h.bf16 %v302
        %v332 = vunpack.c.l.bf16 %v303
        %v333 = vunpack.c.h.bf16 %v303
        %v334 = vunpack.c.l.bf16 %v304
        %v335 = vunpack.c.h.bf16 %v304
        %v336 = vunpack.c.l.bf16 %v305
        %v337 = vunpack.c.h.bf16 %v305
        %v354 = vunpack.c.l.b16 %v273
        %v355 = vunpack.c.l.b16 %v274
        %v356 = vunpack.c.l.b16 %v275
        %v357 = vunpack.c.l.b16 %v276
        %v358 = vunpack.c.l.b16 %v277
        %v359 = vunpack.c.l.b16 %v278
        %v360 = vunpack.c.l.b16 %v279
        %v361 = vunpack.c.l.b16 %v280
        %v362 = vunpack.c.l.b16 %v281
        %v363 = vunpack.c.l.b16 %v282
        %v364 = vunpack.c.l.b16 %v283
        %v365 = vunpack.c.l.b16 %v284
        %v366 = vunpack.c.l.b16 %v285
        %v367 = vunpack.c.l.b16 %v286
        %v368 = vunpack.c.l.b16 %v287
        %v369 = vunpack.c.l.b16 %v288
        %v370 = vpack.c.b16 %v355, %v354
        %v371 = vpack.c.b16 %v357, %v356
        %v372 = vpack.c.b16 %v359, %v358
        %v373 = vpack.c.b16 %v361, %v360
        %v374 = vpack.c.b16 %v363, %v362
        %v375 = vpack.c.b16 %v365, %v364
        %v376 = vpack.c.b16 %v367, %v366
        %v377 = vpack.c.b16 %v369, %v368
        %v379 = vunpack.c.l.b16 %v289
        %v380 = vunpack.c.h.b16 %v289
        %v381 = vpack.c.b16 %v379, %v379
        %v382 = vpack.c.b16 %v380, %v380
        %vm383 = vcmask 64512
        %v385 = vsel %vm383, %v370, 0
        %v388 = vsel %vm383, %v371, 0
        %v391 = vsel %vm383, %v372, 0
        %v394 = vsel %vm383, %v373, 0
        %v397 = vsel %vm383, %v374, 0
        %v400 = vsel %vm383, %v375, 0
        %v403 = vsel %vm383, %v376, 0
        %v406 = vsel %vm383, %v377, 0
        %vm408 = vcmask 1043456
        %v410 = vsel %vm408, %v381, 0
        %v413 = vsel %vm408, %v382, 0
        %415 = vmatprep.subr.bf16.mxu0 0
        %416 = vmatpush1.bf16.msra.mxu0 0
        %417 = vmatprep.subr.bf16.mxu0 0
        %418 = vmatpush1.bf16.msra.mxu0 0
        %419 = vmatprep.subr.bf16.mxu0 0
        %420 = vmatpush1.bf16.msra.mxu0 0
        %421 = vmatprep.subr.bf16.mxu0 0
        %422 = vmatpush1.bf16.msra.mxu0 0
        %423 = vmatprep.subr.bf16.mxu0 0
        %424 = vmatpush1.bf16.msra.mxu0 0
        %425 = vmatprep.subr.bf16.mxu0 0
        %426 = vmatpush1.bf16.msra.mxu0 0
        %427 = vmatprep.subr.bf16.mxu0 0
        %428 = vmatpush1.bf16.msra.mxu0 0
        %429 = vmatprep.subr.bf16.mxu0 %v413
        %430 = vmatpush1.bf16.msra.mxu0 %v410
        %431 = vmatprep.subr.bf16.mxu0 0
        %432 = vmatpush2.bf16.msra.mxu0 0
        %433 = vmatprep.subr.bf16.mxu0 0
        %434 = vmatpush2.bf16.msra.mxu0 0
        %435 = vmatprep.subr.bf16.mxu0 0
        %436 = vmatpush2.bf16.msra.mxu0 0
        %437 = vmatprep.subr.bf16.mxu0 0
        %438 = vmatpush2.bf16.msra.mxu0 0
        %439 = vmatprep.subr.bf16.mxu0 0
        %440 = vmatpush2.bf16.msra.mxu0 0
        %441 = vmatprep.subr.bf16.mxu0 0
        %442 = vmatpush2.bf16.msra.mxu0 0
        %443 = vmatprep.subr.bf16.mxu0 0
        %444 = vmatpush2.bf16.msra.mxu0 0
        %445 = vmatprep.subr.bf16.mxu0 0
        %446 = vmatpush2.bf16.msra.mxu0 0
        %447 = vmatprep.mubr.bf16.mxu0 0
        %448 = vmatmul.mubr.bf16.gmra.mxu0 %v385
        %v449 = vpop.f32.mrf.mxu0
        %v450 = vadd.f32 %v306, %v449
        %v451 = vpop.f32.mrf.mxu0
        %v452 = vadd.f32 %v307, %v451
        %v453 = vpop.f32.mrf.mxu0
        %v454 = vadd.f32 %v308, %v453
        %v455 = vpop.f32.mrf.mxu0
        %v456 = vadd.f32 %v309, %v455
        %457 = vmatprep.mubr.bf16.mxu0 0
        %458 = vmatmul.mubr.bf16.gmra.mxu0 %v388
        %v459 = vpop.f32.mrf.mxu0
        %v460 = vadd.f32 %v310, %v459
        %v461 = vpop.f32.mrf.mxu0
        %v462 = vadd.f32 %v311, %v461
        %v463 = vpop.f32.mrf.mxu0
        %v464 = vadd.f32 %v312, %v463
        %v465 = vpop.f32.mrf.mxu0
        %v466 = vadd.f32 %v313, %v465
        %467 = vmatprep.mubr.bf16.mxu0 0
        %468 = vmatmul.mubr.bf16.gmra.mxu0 %v391
        %v469 = vpop.f32.mrf.mxu0
        %v470 = vadd.f32 %v314, %v469
        %v471 = vpop.f32.mrf.mxu0
        %v472 = vadd.f32 %v315, %v471
        %v473 = vpop.f32.mrf.mxu0
        %v474 = vadd.f32 %v316, %v473
        %v475 = vpop.f32.mrf.mxu0
        %v476 = vadd.f32 %v317, %v475
        %477 = vmatprep.mubr.bf16.mxu0 0
        %478 = vmatmul.mubr.bf16.gmra.mxu0 %v394
        %v479 = vpop.f32.mrf.mxu0
        %v480 = vadd.f32 %v318, %v479
        %v481 = vpop.f32.mrf.mxu0
        %v482 = vadd.f32 %v319, %v481
        %v483 = vpop.f32.mrf.mxu0
        %v484 = vadd.f32 %v320, %v483
        %v485 = vpop.f32.mrf.mxu0
        %v486 = vadd.f32 %v321, %v485
        %487 = vmatprep.mubr.bf16.mxu0 0
        %488 = vmatmul.mubr.bf16.gmra.mxu0 %v397
        %v489 = vpop.f32.mrf.mxu0
        %v490 = vadd.f32 %v322, %v489
        %v491 = vpop.f32.mrf.mxu0
        %v492 = vadd.f32 %v323, %v491
        %v493 = vpop.f32.mrf.mxu0
        %v494 = vadd.f32 %v324, %v493
        %v495 = vpop.f32.mrf.mxu0
        %v496 = vadd.f32 %v325, %v495
        %497 = vmatprep.mubr.bf16.mxu0 0
        %498 = vmatmul.mubr.bf16.gmra.mxu0 %v400
        %v499 = vpop.f32.mrf.mxu0
        %v500 = vadd.f32 %v326, %v499
        %v501 = vpop.f32.mrf.mxu0
        %v502 = vadd.f32 %v327, %v501
        %v503 = vpop.f32.mrf.mxu0
        %v504 = vadd.f32 %v328, %v503
        %v505 = vpop.f32.mrf.mxu0
        %v506 = vadd.f32 %v329, %v505
        %507 = vmatprep.mubr.bf16.mxu0 0
        %508 = vmatmul.mubr.bf16.gmra.mxu0 %v403
        %v509 = vpop.f32.mrf.mxu0
        %v510 = vadd.f32 %v330, %v509
        %v511 = vpop.f32.mrf.mxu0
        %v512 = vadd.f32 %v331, %v511
        %v513 = vpop.f32.mrf.mxu0
        %v514 = vadd.f32 %v332, %v513
        %v515 = vpop.f32.mrf.mxu0
        %v516 = vadd.f32 %v333, %v515
        %517 = vmatprep.mubr.bf16.mxu0 0
        %518 = vmatmul.mubr.bf16.gmra.mxu0 %v406
        %v519 = vpop.f32.mrf.mxu0
        %v520 = vadd.f32 %v334, %v519
        %v521 = vpop.f32.mrf.mxu0
        %v522 = vadd.f32 %v335, %v521
        %v523 = vpop.f32.mrf.mxu0
        %v524 = vadd.f32 %v336, %v523
        %v525 = vpop.f32.mrf.mxu0
        %v526 = vadd.f32 %v337, %v525
        %527 = vdwg.mxu0
        %v528 = vld [vmem:[%s3] sm:$0xff]
        %v529 = vld [vmem:[%s3 + $0x8] sm:$0xff]
        %v530 = vld [vmem:[%s3 + $0x10] sm:$0xff]
        %v531 = vld [vmem:[%s3 + $0x18] sm:$0xff]
        %v532 = vld [vmem:[%s3 + $0x20] sm:$0xff]
        %v533 = vld [vmem:[%s3 + $0x28] sm:$0xff]
        %v534 = vld [vmem:[%s3 + $0x30] sm:$0xff]
        %v535 = vld [vmem:[%s3 + $0x38] sm:$0xff]
        %v536 = vld [vmem:[%s3 + $0x40] sm:$0xff]
        %v537 = vld [vmem:[%s3 + $0x48] sm:$0xff]
        %v538 = vld [vmem:[%s3 + $0x50] sm:$0xff]
        %v539 = vld [vmem:[%s3 + $0x58] sm:$0xff]
        %v540 = vld [vmem:[%s3 + $0x60] sm:$0xff]
        %v541 = vld [vmem:[%s3 + $0x68] sm:$0xff]
        %v542 = vld [vmem:[%s3 + $0x70] sm:$0xff]
        %v543 = vld [vmem:[%s3 + $0x78] sm:$0xff]
        %545 = vset.pattern.permute.xlu0 0
        %546 = vperm.xlu0 %545, %v528
        %v547 = vpop.permute.xlu0 %546
        %550 = vset.pattern.permute.xlu0 0
        %551 = vperm.xlu0 %550, %v529
        %v552 = vpop.permute.xlu0 %551
        %555 = vset.pattern.permute.xlu0 0
        %556 = vperm.xlu0 %555, %v530
        %v557 = vpop.permute.xlu0 %556
        %560 = vset.pattern.permute.xlu0 0
        %561 = vperm.xlu0 %560, %v531
        %v562 = vpop.permute.xlu0 %561
        %565 = vset.pattern.permute.xlu0 0
        %566 = vperm.xlu0 %565, %v532
        %v567 = vpop.permute.xlu0 %566
        %570 = vset.pattern.permute.xlu0 0
        %571 = vperm.xlu0 %570, %v533
        %v572 = vpop.permute.xlu0 %571
        %575 = vset.pattern.permute.xlu0 0
        %576 = vperm.xlu0 %575, %v534
        %v577 = vpop.permute.xlu0 %576
        %580 = vset.pattern.permute.xlu0 0
        %581 = vperm.xlu0 %580, %v535
        %v582 = vpop.permute.xlu0 %581
        %585 = vset.pattern.permute.xlu0 0
        %586 = vperm.xlu0 %585, %v536
        %v587 = vpop.permute.xlu0 %586
        %590 = vset.pattern.permute.xlu0 0
        %591 = vperm.xlu0 %590, %v537
        %v592 = vpop.permute.xlu0 %591
        %595 = vset.pattern.permute.xlu0 0
        %596 = vperm.xlu0 %595, %v538
        %v597 = vpop.permute.xlu0 %596
        %600 = vset.pattern.permute.xlu0 0
        %601 = vperm.xlu0 %600, %v539
        %v602 = vpop.permute.xlu0 %601
        %605 = vset.pattern.permute.xlu0 0
        %606 = vperm.xlu0 %605, %v540
        %v607 = vpop.permute.xlu0 %606
        %610 = vset.pattern.permute.xlu0 0
        %611 = vperm.xlu0 %610, %v541
        %v612 = vpop.permute.xlu0 %611
        %615 = vset.pattern.permute.xlu0 0
        %616 = vperm.xlu0 %615, %v542
        %v617 = vpop.permute.xlu0 %616
        %620 = vset.pattern.permute.xlu0 0
        %621 = vperm.xlu0 %620, %v543
        %v622 = vpop.permute.xlu0 %621
        %v624 = vadd.f32 %v450, %v547
        %v625 = vadd.f32 %v452, %v547
        %v626 = vadd.f32 %v454, %v552
        %v627 = vadd.f32 %v456, %v552
        %v628 = vadd.f32 %v460, %v557
        %v629 = vadd.f32 %v462, %v557
        %v630 = vadd.f32 %v464, %v562
        %v631 = vadd.f32 %v466, %v562
        %v632 = vadd.f32 %v470, %v567
        %v633 = vadd.f32 %v472, %v567
        %v634 = vadd.f32 %v474, %v572
        %v635 = vadd.f32 %v476, %v572
        %v636 = vadd.f32 %v480, %v577
        %v637 = vadd.f32 %v482, %v577
        %v638 = vadd.f32 %v484, %v582
        %v639 = vadd.f32 %v486, %v582
        %v640 = vadd.f32 %v490, %v587
        %v641 = vadd.f32 %v492, %v587
        %v642 = vadd.f32 %v494, %v592
        %v643 = vadd.f32 %v496, %v592
        %v644 = vadd.f32 %v500, %v597
        %v645 = vadd.f32 %v502, %v597
        %v646 = vadd.f32 %v504, %v602
        %v647 = vadd.f32 %v506, %v602
        %v648 = vadd.f32 %v510, %v607
        %v649 = vadd.f32 %v512, %v607
        %v650 = vadd.f32 %v514, %v612
        %v651 = vadd.f32 %v516, %v612
        %v652 = vadd.f32 %v520, %v617
        %v653 = vadd.f32 %v522, %v617
        %v654 = vadd.f32 %v524, %v622
        %v655 = vadd.f32 %v526, %v622
        %v656 = vmax.f32 %v624, 0.0
        %v657 = vmax.f32 %v625, 0.0
        %v658 = vmax.f32 %v626, 0.0
        %v659 = vmax.f32 %v627, 0.0
        %v660 = vmax.f32 %v628, 0.0
        %v661 = vmax.f32 %v629, 0.0
        %v662 = vmax.f32 %v630, 0.0
        %v663 = vmax.f32 %v631, 0.0
        %v664 = vmax.f32 %v632, 0.0
        %v665 = vmax.f32 %v633, 0.0
        %v666 = vmax.f32 %v634, 0.0
        %v667 = vmax.f32 %v635, 0.0
        %v668 = vmax.f32 %v636, 0.0
        %v669 = vmax.f32 %v637, 0.0
        %v670 = vmax.f32 %v638, 0.0
        %v671 = vmax.f32 %v639, 0.0
        %v672 = vmax.f32 %v640, 0.0
        %v673 = vmax.f32 %v641, 0.0
        %v674 = vmax.f32 %v642, 0.0
        %v675 = vmax.f32 %v643, 0.0
        %v676 = vmax.f32 %v644, 0.0
        %v677 = vmax.f32 %v645, 0.0
        %v678 = vmax.f32 %v646, 0.0
        %v679 = vmax.f32 %v647, 0.0
        %v680 = vmax.f32 %v648, 0.0
        %v681 = vmax.f32 %v649, 0.0
        %v682 = vmax.f32 %v650, 0.0
        %v683 = vmax.f32 %v651, 0.0
        %v684 = vmax.f32 %v652, 0.0
        %v685 = vmax.f32 %v653, 0.0
        %v686 = vmax.f32 %v654, 0.0
        %v687 = vmax.f32 %v655, 0.0
        %688 = vst [vmem:[%s259] sm:$0xff] %v656
        %689 = vst [vmem:[%s259 + $0x8] sm:$0xff] %v657
        %690 = vst [vmem:[%s259 + $0x10] sm:$0xff] %v658
        %691 = vst [vmem:[%s259 + $0x18] sm:$0xff] %v659
        %692 = vst [vmem:[%s259 + $0x20] sm:$0xff] %v660
        %693 = vst [vmem:[%s259 + $0x28] sm:$0xff] %v661
        %694 = vst [vmem:[%s259 + $0x30] sm:$0xff] %v662
        %695 = vst [vmem:[%s259 + $0x38] sm:$0xff] %v663
        %696 = vst [vmem:[%s259 + $0x40] sm:$0xff] %v664
        %697 = vst [vmem:[%s259 + $0x48] sm:$0xff] %v665
        %698 = vst [vmem:[%s259 + $0x50] sm:$0xff] %v666
        %699 = vst [vmem:[%s259 + $0x58] sm:$0xff] %v667
        %700 = vst [vmem:[%s259 + $0x60] sm:$0xff] %v668
        %701 = vst [vmem:[%s259 + $0x68] sm:$0xff] %v669
        %702 = vst [vmem:[%s259 + $0x70] sm:$0xff] %v670
        %703 = vst [vmem:[%s259 + $0x78] sm:$0xff] %v671
        %704 = vst [vmem:[%s259 + $0x80] sm:$0xff] %v672
        %705 = vst [vmem:[%s259 + $0x88] sm:$0xff] %v673
        %706 = vst [vmem:[%s259 + $0x90] sm:$0xff] %v674
        %707 = vst [vmem:[%s259 + $0x98] sm:$0xff] %v675
        %708 = vst [vmem:[%s259 + $0xa0] sm:$0xff] %v676
        %709 = vst [vmem:[%s259 + $0xa8] sm:$0xff] %v677
        %710 = vst [vmem:[%s259 + $0xb0] sm:$0xff] %v678
        %711 = vst [vmem:[%s259 + $0xb8] sm:$0xff] %v679
        %712 = vst [vmem:[%s259 + $0xc0] sm:$0xff] %v680
        %713 = vst [vmem:[%s259 + $0xc8] sm:$0xff] %v681
        %714 = vst [vmem:[%s259 + $0xd0] sm:$0xff] %v682
        %715 = vst [vmem:[%s259 + $0xd8] sm:$0xff] %v683
        %716 = vst [vmem:[%s259 + $0xe0] sm:$0xff] %v684
        %717 = vst [vmem:[%s259 + $0xe8] sm:$0xff] %v685
        %718 = vst [vmem:[%s259 + $0xf0] sm:$0xff] %v686
        %719 = vst [vmem:[%s259 + $0xf8] sm:$0xff] %v687
        %s720 = sand.u32 %s141, 1
        %s721 = scalar_lea.sflag [#allocation4], %s720
        %s722 = sand.u32 %s141, 1
        %s723 = smul.addr %s722, 256
        %s724 = scalar_lea.vmem [#allocation5], %s723
        // Predicated region
        $region41: #{tpu_custom_call.1} parent=35 // pred_check
          %p725 = pneg %p151
        $region42: #{tpu_custom_call.1} parent=35 // pred_check_branch
          %727 = sbr.rel (%p725) target = $region44
        $region43: #{tpu_custom_call.1} parent=35 // pred_region
          %s728 = smul.u32 2, %s26
          %s730 = ssub.s32 4096, 4096
          %731 = vsyncadd %s721, %s730
          %s732 = smul.addr %s25, 32
          %s733 = sadd.s32 %s728, %s732
          %s734 = smul.addr %s733, 128
          %s735 = scalar_lea.hbm %s4, %s734
          %s736 = sshll.u32 %s724, 4
          %s737 = int_to_ptr.vmem [resolvable:$true] %s736
          %742 = dma.vmem_to_hbm [thread:$0]  %s737, 4096, %s735, %s721, 256, 256, 16
        $region44: #{tpu_custom_call.1} parent=35 // pred_fallthru
          _
      $region36: #{tpu_custom_call.1} parent=5 // pred_fallthru
        _
      %p743 = scmp.le.s32.totalorder 2, %s16
      // Predicated region
      $region45: #{tpu_custom_call.1} parent=5 // pred_check
        %p744 = pneg %p743
      $region46: #{tpu_custom_call.1} parent=5 // pred_check_branch
        %746 = sbr.rel (%p744) target = $region48
      $region47: #{tpu_custom_call.1} parent=5 // pred_region
        %s747 = ssub.s32 %s16, 2
        // Predicated region
        $region49: #{tpu_custom_call.1} parent=47 // pred_check
          %p748 = pneg %p157
        $region50: #{tpu_custom_call.1} parent=47 // pred_check_branch
          %750 = sbr.rel (%p748) target = $region52
        $region51: #{tpu_custom_call.1} parent=47 // pred_region
          %s751 = sand.u32 %s142, 1
          %s752 = scalar_lea.sflag [#allocation4], %s751
          %s753 = sand.u32 %s142, 1
          %s754 = smul.addr %s753, 256
          %s755 = scalar_lea.vmem [#allocation5], %s754
          %756 = dma.done %s752, 4096
        $region52: #{tpu_custom_call.1} parent=47 // pred_fallthru
          _
      $region48: #{tpu_custom_call.1} parent=5 // pred_fallthru
        _
    $region6: #{tpu_custom_call.1} parent=1 // loop_footer
      %s20 = sadd.s32 1, %s16
    $region7: #{tpu_custom_call.1} parent=1 // loop_footer_branch
      %15 = sbr.rel target = $region3
    $region8: #{tpu_custom_call.1} parent=1 // loop_exit
      _
    %757 = vsyncpa [#allocation3], 1
    %s758 = scalar_lea.sflag [#allocation3], 1
    %759 = vsyncpa %s758, 1
    %760 = vsyncpa [#allocation4], 1
    %s761 = scalar_lea.sflag [#allocation4], 1
    %762 = vsyncpa %s761, 1

</llo_original>
